<compile_context>
chip_gen: v7x
topology: tpu7x:2x2x1
jax: 0.10.0
libtpu: 0.0.40
codegen_flags: <defaults>
</compile_context>

<pallas_src>
import functools

import jax
import jax.numpy as jnp
from jax.experimental import pallas as pl
from jax.experimental.pallas import tpu as pltpu


def _projection_head_kernel(x_ref, w1_ref, b1_ref, w2_ref, b2_ref, out_ref,
                            acc_ref, *, n_rows, tile_rows, needs_mask,
                            cf, cin):
    # TODO(synk): MinkowskiDropout(p=0.4) is identity in eval mode; training-mode
    # stochastic masking (pltpu.prng_*) is intentionally not replicated here.
    k = pl.program_id(1)
    nk = pl.num_programs(1)
    is_last = k == nk - 1

    # --- init running-max accumulator on the first tile of this batch item ---
    @pl.when(k == 0)
    def _():
        acc_ref[...] = jnp.full_like(acc_ref, -jnp.inf)

    if needs_mask:
        # Fast path: full interior tiles need no masking — pure load + max.
        @pl.when(jnp.logical_not(is_last))
        def _():
            acc_ref[...] = jnp.maximum(acc_ref[...],
                                       jnp.max(x_ref[...], axis=1))

        # Ragged last tile only: rows >= n_rows hold unspecified VMEM contents;
        # mask them to -inf so they can never win the max. Skinny (1,T,1) iota
        # broadcasts across lanes instead of materialising a full-tile int32.
        @pl.when(is_last)
        def _():
            tile = x_ref[...]
            row = jax.lax.broadcasted_iota(jnp.int32, (1, tile_rows, 1), 1)
            valid = (k * tile_rows + row) < n_rows
            tile = jnp.where(valid, tile, -jnp.inf)
            acc_ref[...] = jnp.maximum(acc_ref[...],
                                       jnp.max(tile, axis=1))
    else:
        acc_ref[...] = jnp.maximum(acc_ref[...],
                                   jnp.max(x_ref[...], axis=1))

    # --- finalize: undo lane folding, then the tiny MLP runs exactly once ----
    @pl.when(is_last)
    def _():
        pooled = acc_ref[...]                                   # [1, cf]
        # Butterfly max over the folded point copies via cheap lane rolls
        # (cf / cin is a power of two). No-op when cf == cin.
        span = cf
        while span > cin:
            span //= 2
            pooled = jnp.maximum(pooled,
                                 pltpu.roll(pooled, shift=span, axis=1))
        pooled = pooled[:, :cin]                                # [1, cin]
        h = jnp.dot(pooled, w1_ref[...],
                    preferred_element_type=jnp.float32) + b1_ref[...]
        h = jnp.maximum(h, 0.0)
        out = jnp.dot(h, w2_ref[...],
                      preferred_element_type=jnp.float32) + b2_ref[...]
        out_ref[...] = out.astype(out_ref.dtype)[None]          # [1, 1, Cout]


def projection_head(x, w1, b1, w2, b2, *, tile_rows=2048):
    """x: [B, N, Cin] f32; w1: [Cin, Cout]; w2: [Cout, Cout]; b*: [1, Cout]."""
    B, N, Cin = x.shape
    Cout = w1.shape[1]

    # --- lane-densify the point stream ---------------------------------------
    # Cin < 128 wastes 3/4 of every vreg and 4x-pads every VMEM tile. Fold
    # 128 // Cin consecutive points into the lane axis so streamed blocks are
    # lane-dense; the fold copies are max-reduced in the kernel epilogue.
    fold = 128 // Cin if (Cin < 128 and 128 % Cin == 0) else 1

    if fold > 1:
        pad = (-N) % fold
        if pad:
            # Pad with -inf so padded points never win the max.
            x = jnp.pad(x, ((0, 0), (0, pad), (0, 0)),
                        constant_values=float("-inf"))
        nf = (N + pad) // fold
        cf = fold * Cin
        x = x.reshape(B, nf, cf)
    else:
        nf, cf = N, Cin

    # --- tile the (folded) points axis ---------------------------------------
    if nf <= tile_rows:
        tile_rows = nf                      # single full block per batch item
    else:
        # VMEM budget uses the *lane-padded* row footprint; keep the
        # double-buffered x stream <= ~16 MiB (safe incl. v7x's 64 MiB VMEM).
        bytes_per_row = ((cf + 127) // 128) * 128 * 4
        cap = max(8, ((8 << 20) // bytes_per_row) // 8 * 8)
        tile_rows = max(8, (min(tile_rows, cap) // 8) * 8)

    num_k = pl.cdiv(nf, tile_rows)
    needs_mask = (nf % tile_rows) != 0

    kernel = functools.partial(
        _projection_head_kernel,
        n_rows=nf, tile_rows=tile_rows, needs_mask=needs_mask,
        cf=cf, cin=Cin)

    out = pl.pallas_call(
        kernel,
        out_shape=jax.ShapeDtypeStruct((B, 1, Cout), jnp.float32),
        grid_spec=pltpu.PrefetchScalarGridSpec(
            num_scalar_prefetch=0,
            grid=(B, num_k),
            in_specs=[
                # Lane-dense x stream, double-buffered over the points axis.
                pl.BlockSpec((1, tile_rows, cf), lambda b, k: (b, k, 0)),
                # Weights / biases: constant block index -> DMA'd once, resident.
                pl.BlockSpec((Cin, Cout), lambda b, k: (0, 0)),
                pl.BlockSpec((1, Cout), lambda b, k: (0, 0)),
                pl.BlockSpec((Cout, Cout), lambda b, k: (0, 0)),
                pl.BlockSpec((1, Cout), lambda b, k: (0, 0)),
            ],
            # Per-batch-item output block, written once on the last k tile.
            out_specs=pl.BlockSpec((1, 1, Cout), lambda b, k: (b, 0, 0)),
            scratch_shapes=[pltpu.VMEM((1, cf), jnp.float32)],
        ),
        compiler_params=pltpu.CompilerParams(
            # Batch axis parallel (uses both TCs on v7x; no-op on v5e/v6e),
            # points axis is the streamed reduction.
            dimension_semantics=("parallel", "arbitrary"),
            vmem_limit_bytes=32 * 1024 * 1024,
        ),
    )(x, w1, b1, w2, b2)
    return out[:, 0, :]


def reference(x, w1, b1, w2, b2):
    pooled = jnp.max(x, axis=1)
    h = jnp.maximum(pooled @ w1 + b1, 0.0)
    return h @ w2 + b2


if __name__ == "__main__":
    B, IN_CH, OUT_CH = 2, 32, 16

    key = jax.random.PRNGKey(0)
    k_x, k_w1, k_b1, k_w2, k_b2 = jax.random.split(key, 5)

    # nn.Linear params. PyTorch stores weight as [out, in] and computes
    # y = x @ W.T + b; we materialize the transposed [in, out] matrices.
    w1_t = jax.random.normal(k_w1, (OUT_CH, IN_CH), dtype=jnp.float32) * 0.1
    b1 = jax.random.normal(k_b1, (OUT_CH,), dtype=jnp.float32) * 0.1
    w2_t = jax.random.normal(k_w2, (OUT_CH, OUT_CH), dtype=jnp.float32) * 0.1
    b2 = jax.random.normal(k_b2, (OUT_CH,), dtype=jnp.float32) * 0.1

    w1 = w1_t.T                      # [IN_CH, OUT_CH]
    w2 = w2_t.T                      # [OUT_CH, OUT_CH]
    b1_2d = b1.reshape(1, OUT_CH)
    b2_2d = b2.reshape(1, OUT_CH)

    # (N, tile_rows):
    #   (1000, 2048) single folded tile per batch item (typical eval use)
    #   (64,   2048) tiny N
    #   (1000,   64) multi-tile stream + ragged last folded tile (mask path)
    #   (1001,   64) N not divisible by the lane fold + ragged tile
    for n_points, t_rows in ((1000, 2048), (64, 2048), (1000, 64), (1001, 64)):
        x = jax.random.normal(k_x, (B, n_points, IN_CH), dtype=jnp.float32)
        out = jax.block_until_ready(
            projection_head(x, w1, b1_2d, w2, b2_2d, tile_rows=t_rows))
        ref = reference(x, w1, b1_2d, w2, b2_2d)
        assert out.shape == (B, OUT_CH)
        assert jnp.allclose(out, ref, atol=1e-5, rtol=1e-5), \
            f"mismatch vs reference (N={n_points}, tile_rows={t_rows})"

    print("KERNEL_OK")
</pallas_src>

<mosaic_0001>
module attributes {stable_mosaic.version = 11 : i64} {
  func.func @_projection_head_kernel(%arg0: i32, %arg1: i32, %arg2: memref<1x250x128xf32, #tpu.memory_space<vmem>>, %arg3: memref<32x16xf32, #tpu.memory_space<vmem>>, %arg4: memref<1x16xf32, #tpu.memory_space<vmem>>, %arg5: memref<16x16xf32, #tpu.memory_space<vmem>>, %arg6: memref<1x16xf32, #tpu.memory_space<vmem>>, %arg7: memref<1x1x16xf32, #tpu.memory_space<vmem>>, %arg8: memref<1x128xf32, #tpu.memory_space<vmem>>) attributes {dimension_semantics = [#tpu.dimension_semantics<parallel>, #tpu.dimension_semantics<arbitrary>], iteration_bounds = array<i64: 2, 1>, scalar_prefetch = 0 : i64, scratch_operands = 1 : i64, tpu.core_type = #tpu.core_type<tc>, window_params = [{transform_indices = @transform_0, window_bounds = array<i64: 1, 250, 128>}, {pipeline_mode = #tpu.pipeline_mode<synchronous>, transform_indices = @transform_1, window_bounds = array<i64: 32, 16>}, {pipeline_mode = #tpu.pipeline_mode<synchronous>, transform_indices = @transform_2, window_bounds = array<i64: 1, 16>}, {pipeline_mode = #tpu.pipeline_mode<synchronous>, transform_indices = @transform_3, window_bounds = array<i64: 16, 16>}, {pipeline_mode = #tpu.pipeline_mode<synchronous>, transform_indices = @transform_4, window_bounds = array<i64: 1, 16>}, {transform_indices = @transform_5, window_bounds = array<i64: 1, 1, 16>}]} {
    %c0_i32 = arith.constant 0 : i32
    %0 = arith.cmpi eq, %arg1, %c0_i32 : i32
    %c0_i32_0 = arith.constant 0 : i32
    %1 = arith.cmpi eq, %arg1, %c0_i32_0 : i32
    %2 = arith.extui %1 : i1 to i32
    %c0_i32_1 = arith.constant 0 : i32
    %3 = arith.cmpi ne, %2, %c0_i32_1 : i32
    scf.if %3 {
      %cst_9 = arith.constant 0xFF800000 : f32
      %11 = vector.broadcast %cst_9 : f32 to vector<1x128xf32>
      %c0_10 = arith.constant 0 : index
      %c0_11 = arith.constant 0 : index
      %12 = vector.load %arg8[%c0_10, %c0_11] : memref<1x128xf32, #tpu.memory_space<vmem>>, vector<1x128xf32>
      tpu.vector_store %arg8[%c0_10, %c0_11], %11 {strides = array<i32>} : memref<1x128xf32, #tpu.memory_space<vmem>>, vector<1x128xf32>,
    } else {
    }
    %c0 = arith.constant 0 : index
    %c0_2 = arith.constant 0 : index
    %4 = vector.load %arg8[%c0, %c0_2] : memref<1x128xf32, #tpu.memory_space<vmem>>, vector<1x128xf32>
    %c0_3 = arith.constant 0 : index
    %c0_4 = arith.constant 0 : index
    %c0_5 = arith.constant 0 : index
    %5 = vector.load %arg2[%c0_3, %c0_4, %c0_5] : memref<1x250x128xf32, #tpu.memory_space<vmem>>, vector<1x250x128xf32>
    %cst = arith.constant dense<0xFF800000> : vector<1x128xf32>
    %6 = vector.multi_reduction <maximumf>, %5, %cst [1] : vector<1x250x128xf32> to vector<1x128xf32>
    %7 = arith.maximumf %4, %6 : vector<1x128xf32>
    %c0_6 = arith.constant 0 : index
    %c0_7 = arith.constant 0 : index
    %8 = vector.load %arg8[%c0_6, %c0_7] : memref<1x128xf32, #tpu.memory_space<vmem>>, vector<1x128xf32>
    tpu.vector_store %arg8[%c0_6, %c0_7], %7 {strides = array<i32>} : memref<1x128xf32, #tpu.memory_space<vmem>>, vector<1x128xf32>,
    %9 = arith.extui %0 : i1 to i32
    %c0_i32_8 = arith.constant 0 : i32
    %10 = arith.cmpi ne, %9, %c0_i32_8 : i32
    scf.if %10 {
      %c0_9 = arith.constant 0 : index
      %c0_10 = arith.constant 0 : index
      %11 = vector.load %arg8[%c0_9, %c0_10] : memref<1x128xf32, #tpu.memory_space<vmem>>, vector<1x128xf32>
      %c64_i32 = arith.constant 64 : i32
      %12 = tpu.dynamic_rotate %11 by %c64_i32 dim 1 : vector<1x128xf32>, i32 -> vector<1x128xf32>
      %13 = arith.maximumf %11, %12 : vector<1x128xf32>
      %c32_i32 = arith.constant 32 : i32
      %14 = tpu.dynamic_rotate %13 by %c32_i32 dim 1 : vector<1x128xf32>, i32 -> vector<1x128xf32>
      %15 = arith.maximumf %13, %14 : vector<1x128xf32>
      %16 = vector.extract_strided_slice %15 {offsets = [0, 0], sizes = [1, 32], strides = [1, 1]} : vector<1x128xf32> to vector<1x32xf32>
      %c0_11 = arith.constant 0 : index
      %c0_12 = arith.constant 0 : index
      %17 = vector.load %arg3[%c0_11, %c0_12] : memref<32x16xf32, #tpu.memory_space<vmem>>, vector<32x16xf32>
      %cst_13 = arith.constant dense<0.000000e+00> : vector<1x16xf32>
      %18 = tpu.matmul %16, %17, %cst_13 {dimension_numbers = #tpu.dot_dimension_numbers<[1], [0], [0], [1], [0, 0, 1, 1], [], []>} : vector<1x32xf32>, vector<32x16xf32>, vector<1x16xf32> -> vector<1x16xf32>
      %c0_14 = arith.constant 0 : index
      %c0_15 = arith.constant 0 : index
      %19 = vector.load %arg4[%c0_14, %c0_15] : memref<1x16xf32, #tpu.memory_space<vmem>>, vector<1x16xf32>
      %20 = arith.addf %18, %19 : vector<1x16xf32>
      %cst_16 = arith.constant 0.000000e+00 : f32
      %21 = vector.broadcast %cst_16 : f32 to vector<1x16xf32>
      %22 = arith.maximumf %20, %21 : vector<1x16xf32>
      %c0_17 = arith.constant 0 : index
      %c0_18 = arith.constant 0 : index
      %23 = vector.load %arg5[%c0_17, %c0_18] : memref<16x16xf32, #tpu.memory_space<vmem>>, vector<16x16xf32>
      %cst_19 = arith.constant dense<0.000000e+00> : vector<1x16xf32>
      %24 = tpu.matmul %22, %23, %cst_19 {dimension_numbers = #tpu.dot_dimension_numbers<[1], [0], [0], [1], [0, 0, 1, 1], [], []>} : vector<1x16xf32>, vector<16x16xf32>, vector<1x16xf32> -> vector<1x16xf32>
      %c0_20 = arith.constant 0 : index
      %c0_21 = arith.constant 0 : index
      %25 = vector.load %arg6[%c0_20, %c0_21] : memref<1x16xf32, #tpu.memory_space<vmem>>, vector<1x16xf32>
      %26 = arith.addf %24, %25 : vector<1x16xf32>
      %27 = vector.shape_cast %26 : vector<1x16xf32> to vector<1x1x16xf32>
      %c0_22 = arith.constant 0 : index
      %c0_23 = arith.constant 0 : index
      %c0_24 = arith.constant 0 : index
      %28 = vector.load %arg7[%c0_22, %c0_23, %c0_24] : memref<1x1x16xf32, #tpu.memory_space<vmem>>, vector<1x1x16xf32>
      tpu.vector_store %arg7[%c0_22, %c0_23, %c0_24], %27 {strides = array<i32>} : memref<1x1x16xf32, #tpu.memory_space<vmem>>, vector<1x1x16xf32>,
    } else {
    }
    return
  }
  func.func @transform_0(%arg0: i32, %arg1: i32) -> (i32, i32, i32) {
    %c0_i32 = arith.constant 0 : i32
    %c0_i32_0 = arith.constant 0 : i32
    return %arg0, %arg1, %c0_i32 : i32, i32, i32
  }
  func.func @transform_1(%arg0: i32, %arg1: i32) -> (i32, i32) {
    %c0_i32 = arith.constant 0 : i32
    %c0_i32_0 = arith.constant 0 : i32
    %c0_i32_1 = arith.constant 0 : i32
    return %c0_i32, %c0_i32_0 : i32, i32
  }
  func.func @transform_2(%arg0: i32, %arg1: i32) -> (i32, i32) {
    %c0_i32 = arith.constant 0 : i32
    %c0_i32_0 = arith.constant 0 : i32
    %c0_i32_1 = arith.constant 0 : i32
    return %c0_i32, %c0_i32_0 : i32, i32
  }
  func.func @transform_3(%arg0: i32, %arg1: i32) -> (i32, i32) {
    %c0_i32 = arith.constant 0 : i32
    %c0_i32_0 = arith.constant 0 : i32
    %c0_i32_1 = arith.constant 0 : i32
    return %c0_i32, %c0_i32_0 : i32, i32
  }
  func.func @transform_4(%arg0: i32, %arg1: i32) -> (i32, i32) {
    %c0_i32 = arith.constant 0 : i32
    %c0_i32_0 = arith.constant 0 : i32
    %c0_i32_1 = arith.constant 0 : i32
    return %c0_i32, %c0_i32_0 : i32, i32
  }
  func.func @transform_5(%arg0: i32, %arg1: i32) -> (i32, i32, i32) {
    %c0_i32 = arith.constant 0 : i32
    %c0_i32_0 = arith.constant 0 : i32
    %c0_i32_1 = arith.constant 0 : i32
    return %arg0, %c0_i32, %c0_i32_0 : i32, i32, i32
  }
}

</mosaic_0001>

<llo_original>
// kernel: tpu_custom_call.1
$region0: #{tpu_custom_call.1}
  #allocation0 [shape = 'u32[]', space=smem, size = 0x4, offset = 0x4, fixed_abs, tag = 'smem constant byte address 0x4 - core index']
  #allocation1 [shape = 'u32[144,128]{1,0:T(1,128)}', space=vmem, size = 0x12000, scoped, tag = 'internal scratch']
  #allocation2 [shape = 'f32[1,128]{1,0:T(1,128)}', space=vmem, size = 0x200, scoped, tag = 'scratch operand']
  %s0 = inlined_call_operand.vmem [shape: f32[2,250,128], index: 0, kind: input, shape index: {}]
  %s1 = inlined_call_operand.vmem [shape: f32[32,16], index: 1, kind: input, shape index: {}]
  %s2 = inlined_call_operand.vmem [shape: f32[1,16], index: 2, kind: input, shape index: {}]
  %s3 = inlined_call_operand.vmem [shape: f32[16,16], index: 3, kind: input, shape index: {}]
  %s4 = inlined_call_operand.vmem [shape: f32[1,16], index: 4, kind: input, shape index: {}]
  %s5 = inlined_call_operand.hbm [shape: f32[2,1,16], index: 5, kind: output, shape index: {}]
  %s6 = sld [smem:[#allocation0]]
  $region61: #{tpu_custom_call.1} parent=0
    _
  %s8 = ssub.s32 1, %s6
  %s9 = scalar_select 0, %s8, %s6
  $region1: #{tpu_custom_call.1} parent=0
    #allocation3 [shape = 'u8[1024]{0}', space=vmem, size = 0x400, scoped, tag = 'output window, operand 0']
    #allocation4 [shape = 's32[2]{0}', space=sflag, size = 0x8, scoped, tag = 'scoped memory for tpu_custom_call.1']
    %10 = vsyncpa [#allocation4], 0
    %s11 = scalar_lea.sflag [#allocation4], 1
    %12 = vsyncpa %s11, 0
    loop: start=0, step=1, limit=4
    $region2: #{tpu_custom_call.1} parent=1 // loop_pre_header
      _
    $region3: #{tpu_custom_call.1} parent=1 // loop_header
      %s14 = sphi 0, %s18
      %p15 = scmp.ge.s32.totalorder %s14, 4
      %s21 = sphi 0, %s33
      %s22 = sphi 0, %s29
      %s23 = sphi 0, %s21
      %s24 = sphi 0, %s22
      %s25 = sphi 0, %s23
      %s26 = sphi 0, %s24
      %s38 = sphi 0, %s40
      %s41 = sphi 0, %s38
      %s42 = sphi 0, %s41
      %s58 = sphi 0, %s42
      %s62 = sphi 0, %s62
      %s64 = sphi 0, %s62
      %s65 = sphi 0, %s64
      %s79 = sphi 0, %s65
      %s83 = sphi 0, %s83
      %s85 = sphi 0, %s83
      %s86 = sphi 0, %s85
      %s100 = sphi 0, %s86
      %s104 = sphi 0, %s104
      %s106 = sphi 0, %s104
      %s107 = sphi 0, %s106
      %s121 = sphi 0, %s107
      %s125 = sphi 0, %s125
      %s127 = sphi 0, %s125
      %s128 = sphi 0, %s127
      %s142 = sphi 0, %s128
      %s148 = sphi 0, %s150
      %s151 = sphi 0, %s148
      %s152 = sphi 0, %s151
      %s168 = sphi 0, %s152
    $region4: #{tpu_custom_call.1} parent=1 // loop_header_branch
      %17 = sbr.rel (%p15) target = $region8
    $region5: #{tpu_custom_call.1} parent=1 // loop_body
      %s19 = ssub.s32 %s14, 1
      %s20 = ssub.s32 %s14, 2
      %s27 = sadd.s32 1, %s22
      %p28 = scmp.ge.s32.totalorder %s27, 1
      %s29 = scalar_select %p28, 0, %s27
      %s30 = sadd.s32 1, %s21
      %s31 = scalar_select %p28, %s30, %s21
      %p32 = scmp.ge.s32.totalorder %s31, 2
      %s33 = scalar_select %p32, 0, %s31
      %s34 = ssub.s32 %s21, %s33
      %s35 = ssub.s32 %s22, %s29
      %s36 = sor.u32 %s34, %s35
      %p37 = scmp.eq.s32.totalorder %s36, 0
      %s39 = sadd.s32 %s38, 1
      %s40 = scalar_select %p37, %s38, %s39
      %p43 = pneg %p37
      %p44 = scmp.eq.s32.totalorder %s14, 1
      %p45 = por %p43, %p44
      %p46 = scmp.ne.s32.totalorder %s38, %s41
      %p47 = scmp.eq.s32.totalorder %s14, 0
      %p48 = por %p46, %p47
      %p49 = scmp.ne.s32.totalorder %s38, %s41
      %p50 = scmp.eq.s32.totalorder %s19, 1
      %p51 = por %p49, %p50
      %p52 = scmp.ne.s32.totalorder %s41, %s42
      %p53 = scmp.eq.s32.totalorder %s19, 0
      %p54 = por %p52, %p53
      %p55 = scmp.ne.s32.totalorder %s41, %s42
      %p56 = scmp.eq.s32.totalorder %s20, 1
      %p57 = por %p55, %p56
      %p59 = scmp.ne.s32.totalorder %s42, %s58
      %p60 = scmp.eq.s32.totalorder %s20, 0
      %p61 = por %p59, %p60
      %s63 = sadd.s32 %s62, 1
      %p66 = scmp.eq.s32.totalorder %s14, 1
      %p67 = scmp.ne.s32.totalorder %s62, %s64
      %p68 = scmp.eq.s32.totalorder %s14, 0
      %p69 = por %p67, %p68
      %p70 = scmp.ne.s32.totalorder %s62, %s64
      %p71 = scmp.eq.s32.totalorder %s19, 1
      %p72 = por %p70, %p71
      %p73 = scmp.ne.s32.totalorder %s64, %s65
      %p74 = scmp.eq.s32.totalorder %s19, 0
      %p75 = por %p73, %p74
      %p76 = scmp.ne.s32.totalorder %s64, %s65
      %p77 = scmp.eq.s32.totalorder %s20, 1
      %p78 = por %p76, %p77
      %p80 = scmp.ne.s32.totalorder %s65, %s79
      %p81 = scmp.eq.s32.totalorder %s20, 0
      %p82 = por %p80, %p81
      %s84 = sadd.s32 %s83, 1
      %p87 = scmp.eq.s32.totalorder %s14, 1
      %p88 = scmp.ne.s32.totalorder %s83, %s85
      %p89 = scmp.eq.s32.totalorder %s14, 0
      %p90 = por %p88, %p89
      %p91 = scmp.ne.s32.totalorder %s83, %s85
      %p92 = scmp.eq.s32.totalorder %s19, 1
      %p93 = por %p91, %p92
      %p94 = scmp.ne.s32.totalorder %s85, %s86
      %p95 = scmp.eq.s32.totalorder %s19, 0
      %p96 = por %p94, %p95
      %p97 = scmp.ne.s32.totalorder %s85, %s86
      %p98 = scmp.eq.s32.totalorder %s20, 1
      %p99 = por %p97, %p98
      %p101 = scmp.ne.s32.totalorder %s86, %s100
      %p102 = scmp.eq.s32.totalorder %s20, 0
      %p103 = por %p101, %p102
      %s105 = sadd.s32 %s104, 1
      %p108 = scmp.eq.s32.totalorder %s14, 1
      %p109 = scmp.ne.s32.totalorder %s104, %s106
      %p110 = scmp.eq.s32.totalorder %s14, 0
      %p111 = por %p109, %p110
      %p112 = scmp.ne.s32.totalorder %s104, %s106
      %p113 = scmp.eq.s32.totalorder %s19, 1
      %p114 = por %p112, %p113
      %p115 = scmp.ne.s32.totalorder %s106, %s107
      %p116 = scmp.eq.s32.totalorder %s19, 0
      %p117 = por %p115, %p116
      %p118 = scmp.ne.s32.totalorder %s106, %s107
      %p119 = scmp.eq.s32.totalorder %s20, 1
      %p120 = por %p118, %p119
      %p122 = scmp.ne.s32.totalorder %s107, %s121
      %p123 = scmp.eq.s32.totalorder %s20, 0
      %p124 = por %p122, %p123
      %s126 = sadd.s32 %s125, 1
      %p129 = scmp.eq.s32.totalorder %s14, 1
      %p130 = scmp.ne.s32.totalorder %s125, %s127
      %p131 = scmp.eq.s32.totalorder %s14, 0
      %p132 = por %p130, %p131
      %p133 = scmp.ne.s32.totalorder %s125, %s127
      %p134 = scmp.eq.s32.totalorder %s19, 1
      %p135 = por %p133, %p134
      %p136 = scmp.ne.s32.totalorder %s127, %s128
      %p137 = scmp.eq.s32.totalorder %s19, 0
      %p138 = por %p136, %p137
      %p139 = scmp.ne.s32.totalorder %s127, %s128
      %p140 = scmp.eq.s32.totalorder %s20, 1
      %p141 = por %p139, %p140
      %p143 = scmp.ne.s32.totalorder %s128, %s142
      %p144 = scmp.eq.s32.totalorder %s20, 0
      %p145 = por %p143, %p144
      %s146 = ssub.s32 %s21, %s33
      %p147 = scmp.eq.s32.totalorder %s146, 0
      %s149 = sadd.s32 %s148, 1
      %s150 = scalar_select %p147, %s148, %s149
      %p153 = pneg %p147
      %p154 = scmp.eq.s32.totalorder %s14, 1
      %p155 = por %p153, %p154
      %p156 = scmp.ne.s32.totalorder %s148, %s151
      %p157 = scmp.eq.s32.totalorder %s14, 0
      %p158 = por %p156, %p157
      %p159 = scmp.ne.s32.totalorder %s148, %s151
      %p160 = scmp.eq.s32.totalorder %s19, 1
      %p161 = por %p159, %p160
      %p162 = scmp.ne.s32.totalorder %s151, %s152
      %p163 = scmp.eq.s32.totalorder %s19, 0
      %p164 = por %p162, %p163
      %p165 = scmp.ne.s32.totalorder %s151, %s152
      %p166 = scmp.eq.s32.totalorder %s20, 1
      %p167 = por %p165, %p166
      %p169 = scmp.ne.s32.totalorder %s152, %s168
      %p170 = scmp.eq.s32.totalorder %s20, 0
      %p171 = por %p169, %p170
      %p172 = scmp.le.s32.totalorder 1, %s14
      %p173 = scmp.lt.s32.totalorder %s14, 3
      %p174 = pnand %p172, %p173
      %p175 = pneg %p174
      // Predicated region
      $region9: #{tpu_custom_call.1} parent=5 // pred_check
        _
      $region10: #{tpu_custom_call.1} parent=5 // pred_check_branch
        %177 = sbr.rel (%p174) target = $region12
      $region11: #{tpu_custom_call.1} parent=5 // pred_region
        %s178 = ssub.s32 %s14, 1
        // Predicated region
        $region13: #{tpu_custom_call.1} parent=11 // pred_check
          %p179 = pneg %p75
        $region14: #{tpu_custom_call.1} parent=11 // pred_check_branch
          %181 = sbr.rel (%p179) target = $region16
        $region15: #{tpu_custom_call.1} parent=11 // pred_region
          _
        $region16: #{tpu_custom_call.1} parent=11 // pred_fallthru
          _
        // Predicated region
        $region17: #{tpu_custom_call.1} parent=11 // pred_check
          %p182 = pneg %p96
        $region18: #{tpu_custom_call.1} parent=11 // pred_check_branch
          %184 = sbr.rel (%p182) target = $region20
        $region19: #{tpu_custom_call.1} parent=11 // pred_region
          _
        $region20: #{tpu_custom_call.1} parent=11 // pred_fallthru
          _
        // Predicated region
        $region21: #{tpu_custom_call.1} parent=11 // pred_check
          %p185 = pneg %p117
        $region22: #{tpu_custom_call.1} parent=11 // pred_check_branch
          %187 = sbr.rel (%p185) target = $region24
        $region23: #{tpu_custom_call.1} parent=11 // pred_region
          _
        $region24: #{tpu_custom_call.1} parent=11 // pred_fallthru
          _
        // Predicated region
        $region25: #{tpu_custom_call.1} parent=11 // pred_check
          %p188 = pneg %p138
        $region26: #{tpu_custom_call.1} parent=11 // pred_check_branch
          %190 = sbr.rel (%p188) target = $region28
        $region27: #{tpu_custom_call.1} parent=11 // pred_region
          _
        $region28: #{tpu_custom_call.1} parent=11 // pred_fallthru
          _
      $region12: #{tpu_custom_call.1} parent=5 // pred_fallthru
        _
      %p191 = scmp.lt.s32.totalorder %s14, 2
      // Predicated region
      $region29: #{tpu_custom_call.1} parent=5 // pred_check
        %p192 = pneg %p191
      $region30: #{tpu_custom_call.1} parent=5 // pred_check_branch
        %194 = sbr.rel (%p192) target = $region32
      $region31: #{tpu_custom_call.1} parent=5 // pred_region
        // Predicated region
        $region33: #{tpu_custom_call.1} parent=31 // pred_check
          %p195 = pneg %p48
        $region34: #{tpu_custom_call.1} parent=31 // pred_check_branch
          %197 = sbr.rel (%p195) target = $region36
        $region35: #{tpu_custom_call.1} parent=31 // pred_region
          %s198 = smul.u32 32, %s22
          %p199 = scmp.lt.s32.totalorder %s21, 1
          %s200 = scalar_select %p199, %s21, 1
          %p201 = scmp.lt.s32.totalorder %s198, 31
          %s202 = scalar_select %p201, %s198, 31
          %s203 = smul.addr %s200, 32
          %s204 = sadd.s32 %s202, %s203
          %s205 = smul.addr %s204, 8
          %s206 = scalar_lea.vmem %s0, %s205
          %s207 = smul.u32 32, %s22
        $region36: #{tpu_custom_call.1} parent=31 // pred_fallthru
          _
      $region32: #{tpu_custom_call.1} parent=5 // pred_fallthru
        _
      %p208 = scmp.le.s32.totalorder 1, %s14
      %p209 = scmp.lt.s32.totalorder %s14, 3
      %p210 = pnand %p208, %p209
      %p211 = pneg %p210
      // Predicated region
      $region37: #{tpu_custom_call.1} parent=5 // pred_check
        _
      $region38: #{tpu_custom_call.1} parent=5 // pred_check_branch
        %213 = sbr.rel (%p210) target = $region40
      $region39: #{tpu_custom_call.1} parent=5 // pred_region
        %s214 = ssub.s32 %s14, 1
        %s215 = smul.u32 32, %s24
        %p216 = scmp.lt.s32.totalorder %s23, 1
        %s217 = scalar_select %p216, %s23, 1
        %p218 = scmp.lt.s32.totalorder %s215, 31
        %s219 = scalar_select %p218, %s215, 31
        %s220 = smul.addr %s217, 32
        %s221 = sadd.s32 %s219, %s220
        %s222 = smul.addr %s221, 8
        %s223 = scalar_lea.vmem %s0, %s222
        %p224 = pneg %p54
        %p225 = pneg %p51
        %p226 = pneg %p75
        %p227 = pneg %p72
        %p228 = pneg %p96
        %p229 = pneg %p93
        %p230 = pneg %p117
        %p231 = pneg %p114
        %p232 = pneg %p138
        %p233 = pneg %p135
        %p234 = pneg %p164
        %p235 = pneg %p161
        %s236 = sand.u32 %s151, 1
        %s237 = scalar_lea.sflag [#allocation4], %s236
        %s238 = sand.u32 %s151, 1
        %s239 = scalar_lea.vmem [#allocation3], %s238
        %s240 = smul.u32 32, %s24
        %p241 = scmp.lt.s32.totalorder %s23, 1
        %s242 = scalar_select %p241, %s23, 1
        %p243 = scmp.lt.s32.totalorder %s240, 31
        %s244 = scalar_select %p243, %s240, 31
        %s245 = smul.addr %s242, 32
        %s246 = sadd.s32 %s244, %s245
        %s247 = smul.addr %s246, 8
        %s248 = scalar_lea.vmem %s0, %s247
        %s249 = smul.u32 32, %s24
        %p250 = scmp.eq.s32.totalorder %s24, 0
        // Predicated region
        $region41: #{tpu_custom_call.1} parent=39 // pred_check
          %p251 = pneg %p250
        $region42: #{tpu_custom_call.1} parent=39 // pred_check_branch
          %253 = sbr.rel (%p251) target = $region44
        $region43: #{tpu_custom_call.1} parent=39 // pred_region
          %254 = vst [vmem:[#allocation2] sm:$0x1] -inf
        $region44: #{tpu_custom_call.1} parent=39 // pred_fallthru
          _
        %v255 = vld [vmem:[#allocation2] sm:$0x1]
        %v256 = vld [vmem:[%s248] sm:$0xff]
        %v257 = vld [vmem:[%s248 + $0x8] sm:$0xff]
        %v258 = vld [vmem:[%s248 + $0x10] sm:$0xff]
        %v259 = vld [vmem:[%s248 + $0x18] sm:$0xff]
        %v260 = vld [vmem:[%s248 + $0x20] sm:$0xff]
        %v261 = vld [vmem:[%s248 + $0x28] sm:$0xff]
        %v262 = vld [vmem:[%s248 + $0x30] sm:$0xff]
        %v263 = vld [vmem:[%s248 + $0x38] sm:$0xff]
        %v264 = vld [vmem:[%s248 + $0x40] sm:$0xff]
        %v265 = vld [vmem:[%s248 + $0x48] sm:$0xff]
        %v266 = vld [vmem:[%s248 + $0x50] sm:$0xff]
        %v267 = vld [vmem:[%s248 + $0x58] sm:$0xff]
        %v268 = vld [vmem:[%s248 + $0x60] sm:$0xff]
        %v269 = vld [vmem:[%s248 + $0x68] sm:$0xff]
        %v270 = vld [vmem:[%s248 + $0x70] sm:$0xff]
        %v271 = vld [vmem:[%s248 + $0x78] sm:$0xff]
        %v272 = vld [vmem:[%s248 + $0x80] sm:$0xff]
        %v273 = vld [vmem:[%s248 + $0x88] sm:$0xff]
        %v274 = vld [vmem:[%s248 + $0x90] sm:$0xff]
        %v275 = vld [vmem:[%s248 + $0x98] sm:$0xff]
        %v276 = vld [vmem:[%s248 + $0xa0] sm:$0xff]
        %v277 = vld [vmem:[%s248 + $0xa8] sm:$0xff]
        %v278 = vld [vmem:[%s248 + $0xb0] sm:$0xff]
        %v279 = vld [vmem:[%s248 + $0xb8] sm:$0xff]
        %v280 = vld [vmem:[%s248 + $0xc0] sm:$0xff]
        %v281 = vld [vmem:[%s248 + $0xc8] sm:$0xff]
        %v282 = vld [vmem:[%s248 + $0xd0] sm:$0xff]
        %v283 = vld [vmem:[%s248 + $0xd8] sm:$0xff]
        %v284 = vld [vmem:[%s248 + $0xe0] sm:$0xff]
        %v285 = vld [vmem:[%s248 + $0xe8] sm:$0xff]
        %v286 = vld [vmem:[%s248 + $0xf0] sm:$0xff]
        %v287 = vld [vmem:[%s248 + $0xf8] sm:$0x3]
        %v288 = vmax.f32 %v256, %v260
        %v289 = vmax.f32 %v257, %v261
        %v290 = vmax.f32 %v258, %v262
        %v291 = vmax.f32 %v259, %v263
        %v292 = vmax.f32 %v288, %v264
        %v293 = vmax.f32 %v289, %v265
        %v294 = vmax.f32 %v290, %v266
        %v295 = vmax.f32 %v291, %v267
        %v296 = vmax.f32 %v292, %v268
        %v297 = vmax.f32 %v293, %v269
        %v298 = vmax.f32 %v294, %v270
        %v299 = vmax.f32 %v295, %v271
        %v300 = vmax.f32 %v296, %v272
        %v301 = vmax.f32 %v297, %v273
        %v302 = vmax.f32 %v298, %v274
        %v303 = vmax.f32 %v299, %v275
        %v304 = vmax.f32 %v300, %v276
        %v305 = vmax.f32 %v301, %v277
        %v306 = vmax.f32 %v302, %v278
        %v307 = vmax.f32 %v303, %v279
        %v308 = vmax.f32 %v304, %v280
        %v309 = vmax.f32 %v305, %v281
        %v310 = vmax.f32 %v306, %v282
        %v311 = vmax.f32 %v307, %v283
        %v312 = vmax.f32 %v308, %v284
        %v313 = vmax.f32 %v309, %v285
        %v314 = vmax.f32 %v310, %v286
        %vm315 = vcmask 1041408
        %v316 = vsel %vm315, %v287, -inf
        %v317 = vmax.f32 %v311, %v316
        %v318 = vmax.f32 %v312, %v313
        %v319 = vmax.f32 %v314, %v317
        %v320 = vmax.f32 %v318, %v319
        %v321 = vrot.slane %v320, 4
        %v322 = vmax.f32 %v320, %v321
        %v323 = vrot.slane %v322, 2
        %v324 = vmax.f32 %v322, %v323
        %v325 = vrot.slane %v324, 1
        %v326 = vmax.f32 %v324, %v325
        %v327 = vmax.f32 %v255, %v326
        %328 = vst [vmem:[#allocation2] sm:$0x1] %v327
        // Predicated region
        $region45: #{tpu_custom_call.1} parent=39 // pred_check
          %p329 = pneg %p250
        $region46: #{tpu_custom_call.1} parent=39 // pred_check_branch
          %331 = sbr.rel (%p329) target = $region48
        $region47: #{tpu_custom_call.1} parent=39 // pred_region
          %v332 = vld [vmem:[#allocation2] sm:$0x1]
          %333 = vrot.lane.b32.xlu0 %v332, 64
          %v334 = vpop.permute.xlu0 %333
          %v335 = vmax.f32 %v332, %v334
          %336 = vrot.lane.b32.xlu0 %v335, 32
          %v337 = vpop.permute.xlu0 %336
          %v338 = vmax.f32 %v335, %v337
          %v339 = vld [vmem:[%s1] sm:$0xff]
          %v340 = vld [vmem:[%s1 + $0x8] sm:$0xff]
          %v341 = vld [vmem:[%s1 + $0x10] sm:$0xff]
          %v342 = vld [vmem:[%s1 + $0x18] sm:$0xff]
          %v343 = vld [vmem:[%s2] sm:$0x1]
          %vm344 = vcmask 261120
          %v346 = vsel %vm344, %v338, 0
          %348 = vmatprep.subr.mxu0 0.0
          %349 = vmatpush1.msra.mxu0 %v339
          %350 = vmatprep.subr.mxu0 0.0
          %351 = vmatpush1.msra.mxu0 %v340
          %352 = vmatprep.subr.mxu0 0.0
          %353 = vmatpush1.msra.mxu0 %v341
          %354 = vmatprep.subr.mxu0 0.0
          %355 = vmatpush1.msra.mxu0 %v342
          %356 = vmatprep.subr.mxu0 0.0
          %357 = vmatpush1.msra.mxu0 0.0
          %358 = vmatprep.subr.mxu0 0.0
          %359 = vmatpush1.msra.mxu0 0.0
          %360 = vmatprep.subr.mxu0 0.0
          %361 = vmatpush1.msra.mxu0 0.0
          %362 = vmatprep.subr.mxu0 0.0
          %363 = vmatpush1.msra.mxu0 0.0
          %364 = vmatprep.subr.mxu0 0.0
          %365 = vmatpush1.msra.mxu0 0.0
          %366 = vmatprep.subr.mxu0 0.0
          %367 = vmatpush1.msra.mxu0 0.0
          %368 = vmatprep.subr.mxu0 0.0
          %369 = vmatpush1.msra.mxu0 0.0
          %370 = vmatprep.subr.mxu0 0.0
          %371 = vmatpush1.msra.mxu0 0.0
          %372 = vmatprep.subr.mxu0 0.0
          %373 = vmatpush1.msra.mxu0 0.0
          %374 = vmatprep.subr.mxu0 0.0
          %375 = vmatpush1.msra.mxu0 0.0
          %376 = vmatprep.subr.mxu0 0.0
          %377 = vmatpush1.msra.mxu0 0.0
          %378 = vmatprep.subr.mxu0 0.0
          %379 = vmatpush1.msra.mxu0 0.0
          %380 = vmatprep.subr.mxu0 0.0
          %381 = vmatpush1.msra.mxu0 0.0
          %382 = vmatprep.subr.mxu0 0.0
          %383 = vmatpush1.msra.mxu0 0.0
          %384 = vmatprep.subr.mxu0 0.0
          %385 = vmatpush1.msra.mxu0 0.0
          %386 = vmatprep.subr.mxu0 0.0
          %387 = vmatpush1.msra.mxu0 0.0
          %388 = vmatprep.subr.mxu0 0.0
          %389 = vmatpush1.msra.mxu0 0.0
          %390 = vmatprep.subr.mxu0 0.0
          %391 = vmatpush1.msra.mxu0 0.0
          %392 = vmatprep.subr.mxu0 0.0
          %393 = vmatpush1.msra.mxu0 0.0
          %394 = vmatprep.subr.mxu0 0.0
          %395 = vmatpush1.msra.mxu0 0.0
          %396 = vmatprep.subr.mxu0 0.0
          %397 = vmatpush1.msra.mxu0 0.0
          %398 = vmatprep.subr.mxu0 0.0
          %399 = vmatpush1.msra.mxu0 0.0
          %400 = vmatprep.subr.mxu0 0.0
          %401 = vmatpush1.msra.mxu0 0.0
          %402 = vmatprep.subr.mxu0 0.0
          %403 = vmatpush1.msra.mxu0 0.0
          %404 = vmatprep.subr.mxu0 0.0
          %405 = vmatpush1.msra.mxu0 0.0
          %406 = vmatprep.subr.mxu0 0.0
          %407 = vmatpush1.msra.mxu0 0.0
          %408 = vmatprep.subr.mxu0 0.0
          %409 = vmatpush1.msra.mxu0 0.0
          %410 = vmatprep.subr.mxu0 0.0
          %411 = vmatpush1.msra.mxu0 0.0
          %412 = vmatprep.mubr.f32.mxu0 0.0
          %413 = vmatmul.mubr.f32.gmra.mrb[0].mxu0 %v346
          %v414 = vpop.f32.mrb[0].mxu0
          %v415 = vadd.f32 %v343, %v414
          %v416 = vpop.f32.mrb[0].mxu0
          %417 = vdwg.mxu0
          %v418 = vmax.f32 %v415, 0.0
          %v419 = vld [vmem:[%s3] sm:$0xff]
          %v420 = vld [vmem:[%s3 + $0x8] sm:$0xff]
          %v421 = vld [vmem:[%s4] sm:$0x1]
          %vm422 = vcmask 130048
          %v424 = vsel %vm422, %v418, 0
          %426 = vmatprep.subr.mxu0 0.0
          %427 = vmatpush1.msra.mxu0 %v419
          %428 = vmatprep.subr.mxu0 0.0
          %429 = vmatpush1.msra.mxu0 %v420
          %430 = vmatprep.subr.mxu0 0.0
          %431 = vmatpush1.msra.mxu0 0.0
          %432 = vmatprep.subr.mxu0 0.0
          %433 = vmatpush1.msra.mxu0 0.0
          %434 = vmatprep.subr.mxu0 0.0
          %435 = vmatpush1.msra.mxu0 0.0
          %436 = vmatprep.subr.mxu0 0.0
          %437 = vmatpush1.msra.mxu0 0.0
          %438 = vmatprep.subr.mxu0 0.0
          %439 = vmatpush1.msra.mxu0 0.0
          %440 = vmatprep.subr.mxu0 0.0
          %441 = vmatpush1.msra.mxu0 0.0
          %442 = vmatprep.subr.mxu0 0.0
          %443 = vmatpush1.msra.mxu0 0.0
          %444 = vmatprep.subr.mxu0 0.0
          %445 = vmatpush1.msra.mxu0 0.0
          %446 = vmatprep.subr.mxu0 0.0
          %447 = vmatpush1.msra.mxu0 0.0
          %448 = vmatprep.subr.mxu0 0.0
          %449 = vmatpush1.msra.mxu0 0.0
          %450 = vmatprep.subr.mxu0 0.0
          %451 = vmatpush1.msra.mxu0 0.0
          %452 = vmatprep.subr.mxu0 0.0
          %453 = vmatpush1.msra.mxu0 0.0
          %454 = vmatprep.subr.mxu0 0.0
          %455 = vmatpush1.msra.mxu0 0.0
          %456 = vmatprep.subr.mxu0 0.0
          %457 = vmatpush1.msra.mxu0 0.0
          %458 = vmatprep.subr.mxu0 0.0
          %459 = vmatpush1.msra.mxu0 0.0
          %460 = vmatprep.subr.mxu0 0.0
          %461 = vmatpush1.msra.mxu0 0.0
          %462 = vmatprep.subr.mxu0 0.0
          %463 = vmatpush1.msra.mxu0 0.0
          %464 = vmatprep.subr.mxu0 0.0
          %465 = vmatpush1.msra.mxu0 0.0
          %466 = vmatprep.subr.mxu0 0.0
          %467 = vmatpush1.msra.mxu0 0.0
          %468 = vmatprep.subr.mxu0 0.0
          %469 = vmatpush1.msra.mxu0 0.0
          %470 = vmatprep.subr.mxu0 0.0
          %471 = vmatpush1.msra.mxu0 0.0
          %472 = vmatprep.subr.mxu0 0.0
          %473 = vmatpush1.msra.mxu0 0.0
          %474 = vmatprep.subr.mxu0 0.0
          %475 = vmatpush1.msra.mxu0 0.0
          %476 = vmatprep.subr.mxu0 0.0
          %477 = vmatpush1.msra.mxu0 0.0
          %478 = vmatprep.subr.mxu0 0.0
          %479 = vmatpush1.msra.mxu0 0.0
          %480 = vmatprep.subr.mxu0 0.0
          %481 = vmatpush1.msra.mxu0 0.0
          %482 = vmatprep.subr.mxu0 0.0
          %483 = vmatpush1.msra.mxu0 0.0
          %484 = vmatprep.subr.mxu0 0.0
          %485 = vmatpush1.msra.mxu0 0.0
          %486 = vmatprep.subr.mxu0 0.0
          %487 = vmatpush1.msra.mxu0 0.0
          %488 = vmatprep.subr.mxu0 0.0
          %489 = vmatpush1.msra.mxu0 0.0
          %490 = vmatprep.mubr.f32.mxu0 0.0
          %491 = vmatmul.mubr.f32.gmra.mrb[0].mxu0 %v424
          %v492 = vpop.f32.mrb[0].mxu0
          %v493 = vadd.f32 %v421, %v492
          %v494 = vpop.f32.mrb[0].mxu0
          %495 = vdwg.mxu0
          %vm496 = vcmask 122880
          %497 = vst.msk [vmem:[%s239] sm:$0x1] %vm496, %v493
        $region48: #{tpu_custom_call.1} parent=39 // pred_fallthru
          _
        %s498 = sand.u32 %s151, 1
        %s499 = scalar_lea.sflag [#allocation4], %s498
        %s500 = sand.u32 %s151, 1
        %s501 = scalar_lea.vmem [#allocation3], %s500
        // Predicated region
        $region49: #{tpu_custom_call.1} parent=39 // pred_check
          %p502 = pneg %p161
        $region50: #{tpu_custom_call.1} parent=39 // pred_check_branch
          %504 = sbr.rel (%p502) target = $region52
        $region51: #{tpu_custom_call.1} parent=39 // pred_region
          %s506 = ssub.s32 16, 16
          %507 = vsyncadd %s499, %s506
          %s508 = smul.addr %s23, 16
          %s509 = scalar_lea.hbm %s5, %s508
          %s511 = sshll.u32 %s501, 4
          %s512 = int_to_ptr.vmem [resolvable:$true] %s511
          %514 = dma.vmem_to_hbm [thread:$0]  %s512, 16, %s509, %s499
        $region52: #{tpu_custom_call.1} parent=39 // pred_fallthru
          _
      $region40: #{tpu_custom_call.1} parent=5 // pred_fallthru
        _
      %p515 = scmp.le.s32.totalorder 2, %s14
      // Predicated region
      $region53: #{tpu_custom_call.1} parent=5 // pred_check
        %p516 = pneg %p515
      $region54: #{tpu_custom_call.1} parent=5 // pred_check_branch
        %518 = sbr.rel (%p516) target = $region56
      $region55: #{tpu_custom_call.1} parent=5 // pred_region
        %s519 = ssub.s32 %s14, 2
        // Predicated region
        $region57: #{tpu_custom_call.1} parent=55 // pred_check
          %p520 = pneg %p167
        $region58: #{tpu_custom_call.1} parent=55 // pred_check_branch
          %522 = sbr.rel (%p520) target = $region60
        $region59: #{tpu_custom_call.1} parent=55 // pred_region
          %s523 = sand.u32 %s152, 1
          %s524 = scalar_lea.sflag [#allocation4], %s523
          %s525 = sand.u32 %s152, 1
          %s526 = scalar_lea.vmem [#allocation3], %s525
          %527 = dma.done %s524, 16
        $region60: #{tpu_custom_call.1} parent=55 // pred_fallthru
          _
      $region56: #{tpu_custom_call.1} parent=5 // pred_fallthru
        _
    $region6: #{tpu_custom_call.1} parent=1 // loop_footer
      %s18 = sadd.s32 1, %s14
    $region7: #{tpu_custom_call.1} parent=1 // loop_footer_branch
      %13 = sbr.rel target = $region3
    $region8: #{tpu_custom_call.1} parent=1 // loop_exit
      _
    %528 = vsyncpa [#allocation4], 1
    %s529 = scalar_lea.sflag [#allocation4], 1
    %530 = vsyncpa %s529, 1

</llo_original>
